<compile_context>
chip_gen: v6e
topology: v6e:2x2x1
jax: 0.10.0
libtpu: 0.0.40
codegen_flags: <defaults>
</compile_context>

<pallas_src>
import jax
import jax.numpy as jnp
from jax.experimental import pallas as pl
from jax.experimental.pallas import tpu as pltpu


# ---------------------------------------------------------------------------
# Forced-copy path 1: whole-array HBM->HBM DMA (zero VMEM, no grid).
# ---------------------------------------------------------------------------
def _dma_identity_kernel(x_hbm_ref, o_hbm_ref, copy_sem):
    cp = pltpu.make_async_copy(x_hbm_ref, o_hbm_ref, copy_sem)
    cp.start()
    cp.wait()


def _dma_identity_copy_impl(x):
    return pl.pallas_call(
        _dma_identity_kernel,
        out_shape=jax.ShapeDtypeStruct(x.shape, x.dtype),
        in_specs=[pl.BlockSpec(memory_space=pl.ANY)],
        out_specs=pl.BlockSpec(memory_space=pl.ANY),
        scratch_shapes=[pltpu.SemaphoreType.DMA],
        cost_estimate=pl.CostEstimate(
            flops=0,
            transcendentals=0,
            bytes_accessed=2 * x.size * x.dtype.itemsize),
    )(x)


_dma_identity_copy = jax.jit(_dma_identity_copy_impl)


# ---------------------------------------------------------------------------
# Forced-copy path 2: byte-budgeted, lane-dense, row-tiled VMEM copy.
# ---------------------------------------------------------------------------
_BLOCK_BYTE_BUDGET = 1 << 20  # ~1 MiB per block; 2x dbl-buffered in+out ~ 4 MiB VMEM


def _tiled_identity_kernel(x_ref, o_ref):
    o_ref[...] = x_ref[...]


def _sublane_pack(dtype):
    """Minimum sublane granularity for this dtype (8 f32 / 16 bf16 / 32 int8)."""
    bits = jnp.dtype(dtype).itemsize * 8
    if bits >= 32:
        return 8
    if bits == 16:
        return 16
    return 32


def _lane_dense_factorization(total_elems):
    """(rows, cols) with a lane-dense (multiple-of-128) last dim, else None."""
    for cols in (512, 256, 128):
        if total_elems % cols == 0:
            return total_elems // cols, cols
    return None


def _pick_row_tile(rows, cols, itemsize, pack):
    """Row tile: multiple of the dtype's sublane pack, capped by a byte budget,
    and split into >=2 grid steps when possible (v7x has 2 TensorCores)."""
    if rows <= pack:
        return rows  # full-extent row block (satisfies tiling rule via full extent)
    budget_rows = (_BLOCK_BYTE_BUDGET // (cols * itemsize)) // pack * pack
    tile = max(pack, min(rows, budget_rows))
    if tile >= rows and rows >= 2 * pack:
        # Whole array fit in one block: split into 2 blocks so both v7x TCs
        # can issue DMAs (ragged last block is handled by Pallas masking).
        half = (rows + 1) // 2
        tile = ((half + pack - 1) // pack) * pack
    return min(tile, rows)


def _tiled_identity_copy_impl(x):
    orig_shape = x.shape
    total = x.size
    itemsize = x.dtype.itemsize
    pack = _sublane_pack(x.dtype)

    fact = _lane_dense_factorization(total)
    if fact is not None:
        rows, cols = fact
    else:
        # No lane-dense factorization: keep the original last dim full-extent
        # and still tile the leading (row) axis so VMEM stays bounded.
        cols = orig_shape[-1] if len(orig_shape) >= 1 else 1
        cols = max(cols, 1)
        rows = total // cols

    x2 = x.reshape(rows, cols)
    tile = _pick_row_tile(rows, cols, itemsize, pack)
    grid = (pl.cdiv(rows, tile),)

    out2 = pl.pallas_call(
        _tiled_identity_kernel,
        out_shape=jax.ShapeDtypeStruct((rows, cols), x.dtype),
        grid=grid,
        in_specs=[pl.BlockSpec((tile, cols), lambda i: (i, 0))],
        out_specs=pl.BlockSpec((tile, cols), lambda i: (i, 0)),
        compiler_params=pltpu.CompilerParams(
            dimension_semantics=("parallel",)),
        cost_estimate=pl.CostEstimate(
            flops=0,
            transcendentals=0,
            bytes_accessed=2 * total * itemsize),
    )(x2)
    return out2.reshape(orig_shape)


_tiled_identity_copy = jax.jit(_tiled_identity_copy_impl)


# ---------------------------------------------------------------------------
# Module wrapper: semantics of SkipBlock.forward -> (hidden_states, 0)
# ---------------------------------------------------------------------------
def skip_block_forward(hidden_states,
                       layer_past=None,
                       attention_mask=None,
                       head_mask=None,
                       encoder_hidden_states=None,
                       encoder_attention_mask=None,
                       use_cache=False,
                       output_attentions=False,
                       force_pallas_copy=False,
                       copy_mode="dma"):
    """Pallas equivalent of SkipBlock.forward: returns (hidden_states, 0).

    Default path launches no kernel at all (a pure identity's fastest kernel
    is no kernel).  force_pallas_copy=True routes the tensor through either a
    whole-array HBM->HBM DMA (copy_mode="dma", preferred) or a byte-budgeted
    lane-dense tiled VMEM copy (copy_mode="tiled").
    """
    if force_pallas_copy:
        if copy_mode == "dma":
            hidden_states = _dma_identity_copy(hidden_states)
        else:
            hidden_states = _tiled_identity_copy(hidden_states)
    # The reference module returns the Python int 0 as the second element.
    return (hidden_states, 0)


if __name__ == "__main__":
    key = jax.random.PRNGKey(0)
    B, S, H = 2, 8, 32  # small GPT-style hidden states: (batch, seq, hidden)
    hidden_states = jax.random.normal(key, (B, S, H), dtype=jnp.float32)

    # 1) Default path: no kernel launched, exact identity, zero HBM traffic.
    out_fast, zero_fast = skip_block_forward(hidden_states)
    assert zero_fast == 0
    assert out_fast is hidden_states

    # 2) Forced copy, direct HBM->HBM DMA (zero VMEM, no grid loop).
    out_dma, zero_dma = skip_block_forward(
        hidden_states, force_pallas_copy=True, copy_mode="dma")
    out_dma = jax.block_until_ready(out_dma)
    assert zero_dma == 0
    assert out_dma.shape == hidden_states.shape
    assert out_dma.dtype == hidden_states.dtype
    assert bool(jnp.all(out_dma == hidden_states))

    # 3) Forced copy, byte-budgeted lane-dense tiled VMEM copy.
    out_tiled, zero_tiled = skip_block_forward(
        hidden_states, force_pallas_copy=True, copy_mode="tiled")
    out_tiled = jax.block_until_ready(out_tiled)
    assert zero_tiled == 0
    assert bool(jnp.all(out_tiled == hidden_states))

    # 4) Tiled path with bf16 + a non-lane-dense element count
    #    (exercises the dtype-aware sublane pack and the safe fallback).
    hs_bf16 = jax.random.normal(
        jax.random.PRNGKey(1), (2, 8, 33), dtype=jnp.bfloat16)
    out_bf16, _ = skip_block_forward(
        hs_bf16, force_pallas_copy=True, copy_mode="tiled")
    out_bf16 = jax.block_until_ready(out_bf16)
    assert out_bf16.shape == hs_bf16.shape and out_bf16.dtype == hs_bf16.dtype
    assert bool(jnp.all(out_bf16 == hs_bf16))

    print("KERNEL_OK")
</pallas_src>

<mosaic_0001>
module attributes {stable_mosaic.version = 11 : i64} {
  func.func @_dma_identity_kernel(%arg0: memref<2x8x32xf32, #tpu.memory_space<any>>, %arg1: memref<2x8x32xf32, #tpu.memory_space<any>>, %arg2: memref<!tpu.dma_semaphore, #tpu.memory_space<semaphore_mem>>) attributes {dimension_semantics = [], scalar_prefetch = 0 : i64, scratch_operands = 1 : i64, tpu.core_type = #tpu.core_type<tc>} {
    tpu.enqueue_dma source(%arg0 : memref<2x8x32xf32, #tpu.memory_space<any>>) target(%arg1 : memref<2x8x32xf32, #tpu.memory_space<any>>) target_semaphore(%arg2 : memref<!tpu.dma_semaphore, #tpu.memory_space<semaphore_mem>>)
    tpu.wait_dma2 semaphore(%arg2 : memref<!tpu.dma_semaphore, #tpu.memory_space<semaphore_mem>>) src(%arg0 : memref<2x8x32xf32, #tpu.memory_space<any>>) dst(%arg1 : memref<2x8x32xf32, #tpu.memory_space<any>>)
    return
  }
}

</mosaic_0001>

<llo_original>
// kernel: _dma_identity_copy_impl.1
$region0: #{_dma_identity_copy_impl.1}
  #allocation0 [shape = 'u32[]', space=smem, size = 0x4, offset = 0x4, fixed_abs, tag = 'smem constant byte address 0x4 - core index']
  #allocation1 [shape = 'u32[144,128]{1,0:T(1,128)}', space=vmem, size = 0x12000, scoped, tag = 'internal scratch']
  #allocation2 [shape = 's32[1]{0}', space=sflag, size = 0x4, scoped, tag = 'scratch operand']
  #allocation3 [shape = 's32[]', space=sflag, size = 0x4, offset = 0, fixed_abs, tag = 'sflag constant byte address 0x0 - dummy sync flag']
  #allocation4 [shape = 'u32[0]{0}', space=smem, size = 0, offset = 0, fixed_abs, tag = 'smem constant byte address 0x0 - null']
  %s0 = inlined_call_operand.hbm [shape: f32[2,8,32], index: 0, kind: input, shape index: {}]
  %s1 = inlined_call_operand.hbm [shape: f32[2,8,32], index: 1, kind: output, shape index: {}]
  %s2 = sld [smem:[#allocation0]]
  $region2: #{_dma_identity_copy_impl.1} parent=0
    _
  %s4 = ssub.s32 1, %s2
  %s5 = scalar_select 0, %s4, %s2
  %s7 = sshll.u32 1, 14
  %s8 = sxor.u32 4294967295, %s7
  %12 = dma.general %s0, 256, %s1, [#allocation2], 131072, [#allocation4], 0, 0
  %s13 = smul.u32 2, 8
  %s14 = smul.u32 %s13, 1
  %s15 = sshll.u32 %s14, 4
  %16 = dma.done [#allocation2], %s15
  %17 = vsyncmov [#allocation2]
  %s18 = vpop.sfrf %17
  %p19 = scmp.eq.s32.totalorder %s18, 0
  %p20 = pneg %p19
  %22 = shalt.err (%p20)

</llo_original>
